<compile_context>
chip_gen: v6e
topology: v6e:2x2x1
jax: 0.10.0
libtpu: 0.0.40
codegen_flags: <defaults>
</compile_context>

<pallas_src>
import jax
import jax.numpy as jnp
import numpy as np
from jax.experimental import pallas as pl
from jax.experimental.pallas import tpu as pltpu


# ----------------------------------------------------------------------------
# One-time probe: which shift convention does pltpu.roll use on this backend?
# ----------------------------------------------------------------------------
_ROLL_IS_JNP = None


def _roll_matches_jnp_roll():
    global _ROLL_IS_JNP
    if _ROLL_IS_JNP is None:
        def k(x_ref, o_ref):
            o_ref[...] = pltpu.roll(x_ref[...], shift=1, axis=1)

        x = jnp.tile(jnp.arange(128, dtype=jnp.float32), (8, 1))
        out = pl.pallas_call(
            k, out_shape=jax.ShapeDtypeStruct((8, 128), jnp.float32))(x)
        # jnp.roll convention: result[:, 0] == x[:, -1] == 127
        _ROLL_IS_JNP = bool(float(out[0, 0]) == 127.0)
    return _ROLL_IS_JNP


def _cdiv(a, b):
    return -(-a // b)


# ----------------------------------------------------------------------------
# Pallas kernel
# ----------------------------------------------------------------------------
def _make_kernel(L, fw, dilations, T, Tt, HALO, C, Cpad, R, D, S, LC,
                 reverse, roll_is_jnp):
    """Per-(batch, time-tile) kernel.

    Weight order (see _prepare_params):
      0: pre_w   (R, C)              bf16   (zero cols over the x_b half)
      1: pre_b   (R, 1)              f32
      per layer l (4 entries):
        2+4l: fg_w (2D, fw*R+LC)     bf16   fused taps + local conditioning
        3+4l: fg_b (2D, 1)           f32
        4+4l: ds_w (R+S, D)          bf16   fused dense + skip 1x1
        5+4l: ds_b (R+S, 1)          f32
      2+4L..: post1_w (S,S) bf16, post1_b (S,1) f32,
              post2_w (2*Cpad, S) bf16, post2_b (2*Cpad, 1) f32
              (rows laid out so out2[:C] = log_s (zero over x_a rows) and
               out2[Cpad:Cpad+C] = t (zero over x_a rows))
    """
    Wt = Tt + 2 * HALO
    half = (fw - 1) // 2
    n_w = 2 + 4 * L + 4
    Kact = fw * R + LC

    def kernel(*refs):
        x_c, x_l, x_r, lc_c, lc_l, lc_r = refs[:6]
        w = refs[6:6 + n_w]
        out_ref = refs[6 + n_w]
        logs_ref = refs[7 + n_w]
        xw_ref = refs[8 + n_w]          # (C, Wt)        bf16 scratch
        act_ref = refs[9 + n_w]         # (fw*R+LC, Wt)  bf16 scratch

        tid = pl.program_id(1)

        # Assemble [left halo | centre | right halo] working windows (bf16).
        # All lane offsets are multiples of 128.
        xw_ref[:, :HALO] = x_l[0].astype(jnp.bfloat16)
        xw_ref[:, HALO:HALO + Tt] = x_c[0].astype(jnp.bfloat16)
        xw_ref[:, HALO + Tt:] = x_r[0].astype(jnp.bfloat16)
        # Local-conditioning rows of the fused activation stack (written once;
        # they are reused by every layer's fused matmul).
        act_ref[fw * R:Kact, :HALO] = lc_l[0]
        act_ref[fw * R:Kact, HALO:HALO + Tt] = lc_c[0]
        act_ref[fw * R:Kact, HALO + Tt:] = lc_r[0]

        # Validity mask over the working window: kills the clamped / garbage
        # halo columns of boundary tiles and the [T, W) right padding.  This
        # single mask per layer replaces the old per-tap iota/compare/select.
        g = tid * Tt - HALO + jax.lax.broadcasted_iota(jnp.int32, (1, Wt), 1)
        mask = ((g >= 0) & (g < T)).astype(jnp.float32)          # (1, Wt)

        pre_w = w[0][...]
        pre_b = w[1][...]
        cur = jnp.dot(pre_w, xw_ref[...],
                      preferred_element_type=jnp.float32) + pre_b   # (R, Wt)

        skip_sum = None
        for l in range(L):
            d = dilations[l]
            fg_w = w[2 + 4 * l][...]
            fg_b = w[3 + 4 * l][...]
            ds_w = w[4 + 4 * l][...]
            ds_b = w[5 + 4 * l][...]

            # Masked bf16 residual: rolled taps wrap through dead/masked halo
            # columns only, so no per-tap select is needed.  Rolling the bf16
            # copy halves the XLU traffic.
            cur_bf = (cur * mask).astype(jnp.bfloat16)
            for k in range(fw):
                off = (k - half) * d
                if off == 0:
                    act_ref[k * R:(k + 1) * R, :] = cur_bf
                else:
                    shift = ((-off) % Wt) if roll_is_jnp else (off % Wt)
                    act_ref[k * R:(k + 1) * R, :] = pltpu.roll(
                        cur_bf, shift=shift, axis=1)

            # ONE fused matmul: all fw taps + local conditioning (K = fw*R+LC)
            fg = jnp.dot(fg_w, act_ref[...],
                         preferred_element_type=jnp.float32) + fg_b  # (2D, Wt)
            gated = (jnp.tanh(fg[:D]) *
                     jax.nn.sigmoid(fg[D:])).astype(jnp.bfloat16)    # (D, Wt)

            # fused dense + skip 1x1 conv
            ds = jnp.dot(ds_w, gated,
                         preferred_element_type=jnp.float32) + ds_b  # (R+S,Wt)
            cur = cur + ds[:R]
            s = ds[R:]
            skip_sum = s if skip_sum is None else skip_sum + s

        # Postprocessing only over the central (output) columns of the tile.
        skip_c = skip_sum[:, HALO:HALO + Tt]
        p1w = w[2 + 4 * L][...]
        p1b = w[3 + 4 * L][...]
        p2w = w[4 + 4 * L][...]
        p2b = w[5 + 4 * L][...]

        h = jnp.maximum(skip_c, 0.0).astype(jnp.bfloat16)
        h = jnp.dot(p1w, h, preferred_element_type=jnp.float32) + p1b
        h = jnp.maximum(h, 0.0).astype(jnp.bfloat16)
        out2 = jnp.dot(p2w, h,
                       preferred_element_type=jnp.float32) + p2b  # (2Cpad, Tt)

        log_s = out2[:C]                    # exactly 0 on the x_a rows
        t_sh = out2[Cpad:Cpad + C]          # exactly 0 on the x_a rows
        xc = x_c[0]                         # (C, Tt) f32, exact pass-through
        if not reverse:
            out = jnp.exp(log_s) * xc + t_sh
        else:
            out = (xc - t_sh) * jnp.exp(-log_s)
        out_ref[0] = out.astype(out_ref.dtype)

        # Lane-dense logdet partials: fold the Tt valid columns into 128 lanes
        # (x_a rows contribute exact zeros, padded columns are masked out).
        mask_c = mask[:, HALO:HALO + Tt]
        log_s_m = log_s * mask_c
        part = log_s_m[:, :128]
        for blk in range(1, Tt // 128):
            part = part + log_s_m[:, blk * 128:(blk + 1) * 128]
        logs_ref[0] = part                                         # (C, 128)

    return kernel


# ----------------------------------------------------------------------------
# Weight preparation (fusion / padding / bf16 cast) -- done once in the wrapper
# ----------------------------------------------------------------------------
def _prepare_params(params, C, Cpad, R, D, S, LC, fw, L):
    Ch = C // 2
    Kact = fw * R + LC
    pre_w, pre_b = params[0], params[1]
    pre_w_full = jnp.zeros((R, C), jnp.float32).at[:, :Ch].set(pre_w)
    kp = [pre_w_full.astype(jnp.bfloat16), pre_b.reshape(R, 1)]

    i = 2
    for _ in range(L):
        fg_w, fg_b, lc_w, dw, db, sw, sb = params[i:i + 7]
        i += 7
        # Fused (taps + local conditioning) weight: columns [k*R:(k+1)*R]
        # match tap k (offset (k-half)*d) in the stacked activation, columns
        # [fw*R:] match the lc rows.
        w_f = jnp.zeros((2 * D, Kact), jnp.float32)
        for k in range(fw):
            w_f = w_f.at[:, k * R:(k + 1) * R].set(fg_w[:, :, k])
        w_f = w_f.at[:, fw * R:].set(lc_w)
        ds_w = jnp.concatenate([dw, sw], axis=0).astype(jnp.bfloat16)
        ds_b = jnp.concatenate([db, sb], axis=0).reshape(R + S, 1)
        kp += [w_f.astype(jnp.bfloat16), fg_b.reshape(2 * D, 1), ds_w, ds_b]

    p1w, p1b, p2w, p2b = params[i:i + 4]
    kp += [p1w.astype(jnp.bfloat16), p1b.reshape(S, 1)]

    # Fused post2 heads, zero-padded so the affine acts as identity on x_a.
    p2w_f = jnp.zeros((2 * Cpad, S), jnp.float32)
    p2w_f = p2w_f.at[Ch:C, :].set(p2w[:Ch])                 # log_s head
    p2w_f = p2w_f.at[Cpad + Ch:Cpad + C, :].set(p2w[Ch:])   # t head
    p2b_f = jnp.zeros((2 * Cpad, 1), jnp.float32)
    p2b_f = p2b_f.at[Ch:C, 0].set(p2b[:Ch])
    p2b_f = p2b_f.at[Cpad + Ch:Cpad + C, 0].set(p2b[Ch:])
    kp += [p2w_f.astype(jnp.bfloat16), p2b_f]
    return kp


# ----------------------------------------------------------------------------
# Wrapper
# ----------------------------------------------------------------------------
def affine_coupling_forward(x, local_condition, params, logdet=None,
                            reverse=False, fw=3, dilations=(1, 2, 4),
                            time_tile=4096):
    """x: [B, C, T] (NCT); local_condition: [B, LC, T]. Returns (out, logdet)."""
    B, C, T = x.shape
    LC = local_condition.shape[1]
    L = len(dilations)
    R = params[0].shape[0]
    D = params[2].shape[0] // 2
    S = params[7].shape[0]
    assert C % 2 == 0 and R % 8 == 0 and D % 8 == 0

    Cpad = ((C + 7) // 8) * 8
    half = (fw - 1) // 2
    H = sum(half * d for d in dilations)            # receptive-field radius
    HALO = max(128, _cdiv(H, 128) * 128)            # per-side recompute halo

    # Balanced time tiles (multiple of HALO, ~<= time_tile lanes each).
    nt0 = max(1, _cdiv(T, max(time_tile, HALO)))
    Tt = _cdiv(_cdiv(T, nt0), HALO) * HALO
    NT = _cdiv(T, Tt)
    W = NT * Tt

    x_p = x.astype(jnp.float32)
    lc_p = local_condition.astype(jnp.bfloat16)     # bf16 DMA (review)
    if W != T:
        x_p = jnp.pad(x_p, ((0, 0), (0, 0), (0, W - T)))
        lc_p = jnp.pad(lc_p, ((0, 0), (0, 0), (0, W - T)))

    kparams = _prepare_params(params, C, Cpad, R, D, S, LC, fw, L)
    kernel = _make_kernel(L, fw, tuple(dilations), T, Tt, HALO, C, Cpad,
                          R, D, S, LC, reverse, _roll_matches_jnp_roll())

    nhb = Tt // HALO            # HALO-sized blocks per time tile
    n_hblk = W // HALO          # total HALO-sized blocks along time

    def cmap(b, t):
        return (b, 0, t)

    def lmap(b, t):             # left halo (clamped; masked in-kernel at t=0)
        return (b, 0, jnp.maximum(t * nhb - 1, 0))

    def rmap(b, t):             # right halo (clamped; masked in-kernel at end)
        return (b, 0, jnp.minimum((t + 1) * nhb, n_hblk - 1))

    def _w_spec(a):
        return pl.BlockSpec(a.shape, lambda b, t, nd=a.ndim: (0,) * nd)

    in_specs = [
        pl.BlockSpec((1, C, Tt), cmap),      # x centre
        pl.BlockSpec((1, C, HALO), lmap),    # x left halo
        pl.BlockSpec((1, C, HALO), rmap),    # x right halo
        pl.BlockSpec((1, LC, Tt), cmap),     # lc centre (bf16)
        pl.BlockSpec((1, LC, HALO), lmap),   # lc left halo
        pl.BlockSpec((1, LC, HALO), rmap),   # lc right halo
    ] + [_w_spec(p) for p in kparams]

    out_specs = [
        pl.BlockSpec((1, C, Tt), cmap),      # output tile (NCT)
        pl.BlockSpec((1, C, 128), cmap),     # lane-dense logdet partials
    ]
    out_shape = (
        jax.ShapeDtypeStruct((B, C, W), jnp.float32),
        jax.ShapeDtypeStruct((B, C, NT * 128), jnp.float32),
    )
    scratch_shapes = [
        pltpu.VMEM((C, Tt + 2 * HALO), jnp.bfloat16),            # x window
        pltpu.VMEM((fw * R + LC, Tt + 2 * HALO), jnp.bfloat16),  # fused act
    ]

    out_p, logs_partial = pl.pallas_call(
        kernel,
        out_shape=out_shape,
        grid_spec=pltpu.PrefetchScalarGridSpec(
            num_scalar_prefetch=0,
            grid=(B, NT),
            in_specs=in_specs,
            out_specs=out_specs,
            scratch_shapes=scratch_shapes,
        ),
        compiler_params=pltpu.CompilerParams(
            dimension_semantics=("parallel", "parallel"),
            vmem_limit_bytes=48 * 1024 * 1024),
    )(x_p, x_p, x_p, lc_p, lc_p, lc_p, *kparams)

    out = out_p[:, :, :T] if W != T else out_p
    logs_sum = jnp.sum(logs_partial, axis=(1, 2))                # (B,)
    if logdet is not None:
        logdet = logdet + logs_sum if not reverse else logdet - logs_sum
    return out, logdet


# ----------------------------------------------------------------------------
# Deterministic synthetic parameters (torch Conv1d orientation)
# ----------------------------------------------------------------------------
def init_params(key, C, R, D, S, LC, fw, L, scale=0.1):
    Ch = C // 2
    n = 2 + 7 * L + 4
    keys = iter(jax.random.split(key, n))

    def w(shape):
        return scale * jax.random.normal(next(keys), shape, jnp.float32)

    params = [w((R, Ch)), w((R,))]                          # preprocessing 1x1
    for _ in range(L):
        params += [
            w((2 * D, R, fw)), w((2 * D,)),                 # fused filter+gate
            w((2 * D, LC)),                                 # lc 1x1 (no bias)
            w((R, D)), w((R,)),                             # dense 1x1
            w((S, D)), w((S,)),                             # skip 1x1
        ]
    params += [w((S, S)), w((S,)),                          # post conv 1
               w((C, S)), w((C,))]                          # post conv 2
    # round through bf16 so the kernel's bf16 weight cast is exact
    return [p.astype(jnp.bfloat16).astype(jnp.float32) for p in params]


# ----------------------------------------------------------------------------
# Pure-JAX reference (NCT in / NCT out), f32 math
# ----------------------------------------------------------------------------
def reference_forward(x, lc, params, logdet, fw, dilations, reverse=False):
    B, C, T = x.shape
    Ch = C // 2
    D = params[2].shape[0] // 2
    xb = jnp.transpose(x, (0, 2, 1)).astype(jnp.float32)
    lcb = jnp.transpose(lc, (0, 2, 1)).astype(jnp.float32)
    x_a, x_b = xb[..., :Ch], xb[..., Ch:]

    cur = x_a @ params[0].T + params[1]
    i = 2
    skip = 0.0
    for d in dilations:
        fg_w, fg_b, lc_w, dw, db, sw, sb = params[i:i + 7]
        i += 7
        pad = (fw - 1) // 2 * d
        padded = jnp.pad(cur, ((0, 0), (pad, pad), (0, 0)))
        fg = jnp.zeros(cur.shape[:2] + (fg_w.shape[0],), jnp.float32) + fg_b
        for k in range(fw):
            tap = padded[:, k * d:k * d + T, :]
            fg = fg + tap @ fg_w[:, :, k].T
        fg = fg + lcb @ lc_w.T
        filt, gate = fg[..., :D], fg[..., D:]
        gated = jnp.tanh(filt) * jax.nn.sigmoid(gate)
        cur = gated @ dw.T + db + cur
        skip = skip + gated @ sw.T + sb

    p1w, p1b, p2w, p2b = params[i:i + 4]
    h = jnp.maximum(skip, 0.0)
    h = jnp.maximum(h @ p1w.T + p1b, 0.0)
    out2 = h @ p2w.T + p2b
    log_s, t = out2[..., :Ch], out2[..., Ch:]
    if not reverse:
        new_b = jnp.exp(log_s) * x_b + t
        ld = None if logdet is None else logdet + jnp.sum(log_s, axis=(1, 2))
    else:
        new_b = (x_b - t) * jnp.exp(-log_s)
        ld = None if logdet is None else logdet - jnp.sum(log_s, axis=(1, 2))
    out = jnp.transpose(jnp.concatenate([x_a, new_b], axis=-1), (0, 2, 1))
    return out, ld


# ----------------------------------------------------------------------------
if __name__ == "__main__":
    # input_channels=8, wn_filter_width=3, wn_dilation_layers=3,
    # wn_residual_channels=16, wn_dilation_channels=16, wn_skip_channels=16,
    # local_condition_channels=8; batch=2, time=16.
    B, C, T = 2, 8, 16
    fw, L = 3, 3
    R, D, S, LC = 16, 16, 16, 8
    dilations = tuple(2 ** i for i in range(L))

    key = jax.random.PRNGKey(0)
    kx, klc, kp, kx2, klc2 = jax.random.split(key, 5)
    x = jax.random.normal(kx, (B, C, T), jnp.float32)
    lc = jax.random.normal(klc, (B, LC, T), jnp.float32)
    logdet = jnp.zeros((B,), jnp.float32)
    params = init_params(kp, C, R, D, S, LC, fw, L)

    # forward
    out, ld = affine_coupling_forward(x, lc, params, logdet=logdet,
                                      reverse=False, fw=fw, dilations=dilations)
    out = jax.block_until_ready(out)
    ld = jax.block_until_ready(ld)
    ref_out, ref_ld = reference_forward(x, lc, params, logdet, fw, dilations,
                                        reverse=False)
    np.testing.assert_allclose(np.asarray(out), np.asarray(ref_out),
                               rtol=5e-2, atol=5e-2)
    np.testing.assert_allclose(np.asarray(ld), np.asarray(ref_ld),
                               rtol=5e-2, atol=2e-1)

    # reverse
    out_r, ld_r = affine_coupling_forward(x, lc, params, logdet=logdet,
                                          reverse=True, fw=fw,
                                          dilations=dilations)
    out_r = jax.block_until_ready(out_r)
    ld_r = jax.block_until_ready(ld_r)
    ref_out_r, ref_ld_r = reference_forward(x, lc, params, logdet, fw,
                                            dilations, reverse=True)
    np.testing.assert_allclose(np.asarray(out_r), np.asarray(ref_out_r),
                               rtol=5e-2, atol=5e-2)
    np.testing.assert_allclose(np.asarray(ld_r), np.asarray(ref_ld_r),
                               rtol=5e-2, atol=2e-1)

    # multi-tile path: forces 3 time tiles to exercise halo blocks + masking
    B2, T2 = 1, 300
    x2 = jax.random.normal(kx2, (B2, C, T2), jnp.float32)
    lc2 = jax.random.normal(klc2, (B2, LC, T2), jnp.float32)
    ld0 = jnp.zeros((B2,), jnp.float32)
    out2, ld2 = affine_coupling_forward(x2, lc2, params, logdet=ld0,
                                        reverse=False, fw=fw,
                                        dilations=dilations, time_tile=128)
    out2 = jax.block_until_ready(out2)
    ld2 = jax.block_until_ready(ld2)
    ref_out2, ref_ld2 = reference_forward(x2, lc2, params, ld0, fw, dilations,
                                          reverse=False)
    np.testing.assert_allclose(np.asarray(out2), np.asarray(ref_out2),
                               rtol=5e-2, atol=5e-2)
    np.testing.assert_allclose(np.asarray(ld2), np.asarray(ref_ld2),
                               rtol=5e-2, atol=5e-1)

    print("KERNEL_OK")
</pallas_src>

<mosaic_0001>
module attributes {stable_mosaic.version = 11 : i64} {
  func.func @k(%arg0: memref<8x128xf32, #tpu.memory_space<vmem>>, %arg1: memref<8x128xf32, #tpu.memory_space<vmem>>) attributes {dimension_semantics = [], scalar_prefetch = 0 : i64, scratch_operands = 0 : i64, tpu.core_type = #tpu.core_type<tc>} {
    %c0 = arith.constant 0 : index
    %c0_0 = arith.constant 0 : index
    %0 = vector.load %arg0[%c0, %c0_0] : memref<8x128xf32, #tpu.memory_space<vmem>>, vector<8x128xf32>
    %c1_i32 = arith.constant 1 : i32
    %1 = tpu.dynamic_rotate %0 by %c1_i32 dim 1 : vector<8x128xf32>, i32 -> vector<8x128xf32>
    %c0_1 = arith.constant 0 : index
    %c0_2 = arith.constant 0 : index
    %2 = vector.load %arg1[%c0_1, %c0_2] : memref<8x128xf32, #tpu.memory_space<vmem>>, vector<8x128xf32>
    tpu.vector_store %arg1[%c0_1, %c0_2], %1 {strides = array<i32>} : memref<8x128xf32, #tpu.memory_space<vmem>>, vector<8x128xf32>,
    return
  }
}

</mosaic_0001>

<llo_original>
// kernel: tpu_custom_call.1
$region0: #{tpu_custom_call.1}
  #allocation0 [shape = 'u32[]', space=smem, size = 0x4, offset = 0x4, fixed_abs, tag = 'smem constant byte address 0x4 - core index']
  #allocation1 [shape = 'u32[144,128]{1,0:T(1,128)}', space=vmem, size = 0x12000, scoped, tag = 'internal scratch']
  %s0 = inlined_call_operand.hbm [shape: f32[8,128], index: 0, kind: input, shape index: {}]
  %s1 = inlined_call_operand.hbm [shape: f32[8,128], index: 1, kind: output, shape index: {}]
  %s2 = sld [smem:[#allocation0]]
  $region18: #{tpu_custom_call.1} parent=0
    _
  %s4 = ssub.s32 1, %s2
  %s5 = scalar_select 0, %s4, %s2
  $region1: #{tpu_custom_call.1} parent=0
    #allocation2 [shape = 'u8[4096]{0}', space=vmem, size = 0x1000, scoped, tag = 'input window, operand 0, single buffered']
    #allocation3 [shape = 's32[1]{0}', space=sflag, size = 0x4, scoped, tag = 'scoped memory for tpu_custom_call.1']
    #allocation4 [shape = 's32[1]{0}', space=sflag, size = 0x4, scoped, tag = 'scoped memory for tpu_custom_call.1']
    #allocation5 [shape = 'u8[4096]{0}', space=vmem, size = 0x1000, scoped, tag = 'output window, operand 0, single buffered']
    %6 = vsyncpa [#allocation3], 0
    %7 = vsyncpa [#allocation4], 0
    // Predicated region
    $region2: #{tpu_custom_call.1} parent=1 // pred_check
      _
    $region3: #{tpu_custom_call.1} parent=1 // pred_check_branch
      %9 = sbr.rel (0) target = $region5
    $region4: #{tpu_custom_call.1} parent=1 // pred_region
      %s11 = ssub.s32 128, 128
      %12 = vsyncadd [#allocation3], %s11
      %s14 = sshll.u32 [#allocation2], 4
      %s15 = int_to_ptr.vmem [resolvable:$true] %s14
      %17 = dma.hbm_to_vmem [thread:$0]  %s0, 128, %s15, [#allocation3]
    $region5: #{tpu_custom_call.1} parent=1 // pred_fallthru
      _
    // Predicated region
    $region6: #{tpu_custom_call.1} parent=1 // pred_check
      _
    $region7: #{tpu_custom_call.1} parent=1 // pred_check_branch
      %19 = sbr.rel (0) target = $region9
    $region8: #{tpu_custom_call.1} parent=1 // pred_region
      %20 = dma.done [#allocation3], 128
    $region9: #{tpu_custom_call.1} parent=1 // pred_fallthru
      _
    %v21 = vld [vmem:[#allocation2] sm:$0xff]
    %22 = vrot.lane.b32.xlu0 %v21, 1
    %v23 = vpop.permute.xlu0 %22
    %24 = vst [vmem:[#allocation5] sm:$0xff] %v23
    // Predicated region
    $region10: #{tpu_custom_call.1} parent=1 // pred_check
      _
    $region11: #{tpu_custom_call.1} parent=1 // pred_check_branch
      %26 = sbr.rel (0) target = $region13
    $region12: #{tpu_custom_call.1} parent=1 // pred_region
      %s28 = ssub.s32 128, 128
      %29 = vsyncadd [#allocation4], %s28
      %s31 = sshll.u32 [#allocation5], 4
      %s32 = int_to_ptr.vmem [resolvable:$true] %s31
      %34 = dma.vmem_to_hbm [thread:$0]  %s32, 128, %s1, [#allocation4]
    $region13: #{tpu_custom_call.1} parent=1 // pred_fallthru
      _
    // Predicated region
    $region14: #{tpu_custom_call.1} parent=1 // pred_check
      _
    $region15: #{tpu_custom_call.1} parent=1 // pred_check_branch
      %36 = sbr.rel (0) target = $region17
    $region16: #{tpu_custom_call.1} parent=1 // pred_region
      %37 = dma.done [#allocation4], 128
    $region17: #{tpu_custom_call.1} parent=1 // pred_fallthru
      _
    %38 = vsyncpa [#allocation3], 1
    %39 = vsyncpa [#allocation4], 1

</llo_original>
